<compile_context>
chip_gen: v5e
topology: v5e:2x2
jax: 0.10.0
libtpu: 0.0.40
codegen_flags: <defaults>
</compile_context>

<pallas_src>
import jax
import jax.numpy as jnp
from jax import lax
from jax.experimental import pallas as pl
from jax.experimental.pallas import tpu as pltpu


def _round_up(a, b):
    return ((a + b - 1) // b) * b


def _pick_tile_d(D, target, prefer_split):
    """Largest multiple-of-128 divisor of D that is <= target (or D itself when
    D is not lane-aligned).  With prefer_split, guarantee >= 2 lane tiles when
    possible so both v7x TensorCores get disjoint halves of the HBM read."""
    if D % 128 != 0:
        return D
    divisors = [t for t in range(128, D + 1, 128) if D % t == 0]
    fitting = [t for t in divisors if t <= target]
    tile = max(fitting) if fitting else divisors[0]
    if prefer_split and tile == D and len(divisors) > 1:
        tile = max(t for t in divisors if t < D)
    return tile


def _pick_tile_n(tile_n, n_total, tile_d, itemsize):
    if tile_n is None:
        # ~4 MiB feature block so the ~0.35 us per-grid-step overhead stays
        # well under the block's HBM time (measured 256->1024 row tiles move
        # from ~63% to ~86% of HBM roofline).
        tile_n = (4 * 1024 * 1024) // max(1, tile_d * itemsize)
        tile_n = int(min(max(tile_n, 512), 4096))
    if tile_n >= n_total:
        return n_total                      # one full block (== array dim is allowed)
    return max(8, (tile_n // 8) * 8)


def _vmem_limit(need_bytes):
    # Raise the scoped-VMEM cap above the 16/32 MiB defaults when the tiles
    # need it; ceiling kept sane for v7x's 64 MiB/TC (our tiles stay far below).
    return int(min(max(need_bytes + (8 << 20), 32 << 20), 96 << 20))


# --------------------------------------------------------------------------- #
# sum / mean : MXU mask-matmul path
# --------------------------------------------------------------------------- #
def _make_sum_mean_kernel(pooling, tile_g, tile_n, n_total, ragged,
                          compute_dtype, approx_recip):
    def kernel(starts_ref, counts_ref, feat_ref, out_ref, acc_ref):
        ni = pl.program_id(2)
        last = pl.num_programs(2) - 1

        @pl.when(ni == 0)
        def _init():
            acc_ref[...] = jnp.zeros_like(acc_ref)

        starts = starts_ref[...]                          # (tile_g, 1) int32
        counts = counts_ref[...]                          # (tile_g, 1) int32
        node_base = ni * tile_n
        node_ids = node_base + lax.broadcasted_iota(
            jnp.int32, (tile_g, tile_n), 1)
        # 0/1 segment-membership mask; reduction runs on the MXU.  Mask and x
        # stay in the compute dtype (bf16 for bf16 inputs -> full MXU rate).
        mask = ((node_ids >= starts) & (node_ids < starts + counts)
                ).astype(compute_dtype)                   # (tile_g, tile_n)
        x = feat_ref[...].astype(compute_dtype)           # (tile_n, tile_d)

        def _accumulate(xv):
            acc_ref[...] += jnp.dot(mask, xv,
                                    preferred_element_type=jnp.float32)

        if ragged:
            # Only the final node tile can contain garbage (OOB-padded) rows;
            # zero them there so 0 * NaN cannot reach the MXU accumulation.
            # All other steps are select-free.
            @pl.when(ni != last)
            def _body():
                _accumulate(x)

            @pl.when(ni == last)
            def _body_tail():
                node_col = node_base + lax.broadcasted_iota(
                    jnp.int32, (tile_n, 1), 0)
                _accumulate(jnp.where(node_col < n_total, x, 0.0))
        else:
            _accumulate(x)

        @pl.when(ni == last)
        def _finalize():
            acc = acc_ref[...]
            if pooling == "mean":
                denom = jnp.maximum(counts, 1).astype(jnp.float32)
                # Reciprocal of the small (tile_g, 1) column + one broadcast
                # multiply instead of dividing the whole (tile_g, tile_d) tile.
                acc = acc * pl.reciprocal(denom, approx=approx_recip)
            out_ref[...] = acc.astype(out_ref.dtype)

    return kernel


def _sum_mean_pool(feat, starts, counts, pooling, out_dtype, compute_dtype,
                   tile_n, tile_g, tile_d):
    n_total, D = feat.shape
    n_graphs = int(counts.shape[0])
    itemsize = jnp.dtype(feat.dtype).itemsize

    if tile_g is None:
        tile_g = 256 if n_graphs > 128 else 128          # fewer feature re-reads
    tile_g = min(tile_g, _round_up(n_graphs, 8))
    n_graphs_pad = _round_up(n_graphs, tile_g)
    n_graph_tiles = n_graphs_pad // tile_g

    if tile_d is None:
        tile_d = _pick_tile_d(D, target=512,
                              prefer_split=(n_graph_tiles == 1))
    assert D % tile_d == 0, "tile_d must divide D"
    n_d_tiles = D // tile_d

    tile_n = _pick_tile_n(tile_n, n_total, tile_d, itemsize)
    n_node_tiles = pl.cdiv(n_total, tile_n)
    ragged = (n_total % tile_n) != 0

    pad = n_graphs_pad - n_graphs
    starts_p = jnp.pad(starts, (0, pad)).reshape(n_graphs_pad, 1)
    counts_p = jnp.pad(counts, (0, pad)).reshape(n_graphs_pad, 1)

    approx_recip = jnp.dtype(out_dtype).itemsize < 4

    need = (2 * tile_n * tile_d * itemsize               # feature block (dbl buf)
            + 2 * tile_g * tile_d * jnp.dtype(out_dtype).itemsize   # out block
            + tile_g * tile_d * 4                        # f32 accumulator
            + 4 * tile_g * 128 * 4)                      # starts/counts, lane-padded

    out = pl.pallas_call(
        _make_sum_mean_kernel(pooling, tile_g, tile_n, n_total, ragged,
                              compute_dtype, approx_recip),
        out_shape=jax.ShapeDtypeStruct((n_graphs_pad, D), out_dtype),
        grid_spec=pltpu.PrefetchScalarGridSpec(
            num_scalar_prefetch=0,
            grid=(n_graph_tiles, n_d_tiles, n_node_tiles),
            in_specs=[
                pl.BlockSpec((tile_g, 1), lambda gi, di, ni: (gi, 0)),   # starts
                pl.BlockSpec((tile_g, 1), lambda gi, di, ni: (gi, 0)),   # counts
                pl.BlockSpec((tile_n, tile_d), lambda gi, di, ni: (ni, di)),
            ],
            out_specs=pl.BlockSpec((tile_g, tile_d),
                                   lambda gi, di, ni: (gi, di)),
            scratch_shapes=[pltpu.VMEM((tile_g, tile_d), jnp.float32)],
        ),
        compiler_params=pltpu.CompilerParams(
            dimension_semantics=("parallel", "parallel", "arbitrary"),
            vmem_limit_bytes=_vmem_limit(need)),
    )(starts_p, counts_p, feat)
    return out[:n_graphs]


# --------------------------------------------------------------------------- #
# max : single-pass VPU path with per-tile intersecting-graph ranges
# --------------------------------------------------------------------------- #
def _make_max_kernel(tile_n, compute_dtype):
    def kernel(g_lo_ref, g_hi_ref, starts_ref, counts_ref,
               feat_ref, out_ref, acc_ref):
        ni = pl.program_id(1)

        @pl.when(ni == 0)
        def _init():
            acc_ref[...] = jnp.full_like(acc_ref, -jnp.inf)

        x = feat_ref[...].astype(compute_dtype)            # (tile_n, tile_d)
        node_col = ni * tile_n + lax.broadcasted_iota(
            jnp.int32, (tile_n, 1), 0)                     # (tile_n, 1)

        # Only the graphs intersecting this node tile (contiguous range,
        # precomputed on device, scalar-prefetched to SMEM).  Garbage rows of a
        # ragged final tile never satisfy the index mask -> replaced by -inf.
        @pl.loop(g_lo_ref[ni], g_hi_ref[ni])
        def _per_graph(g):
            s = starts_ref[g]
            c = counts_ref[g]
            m = (node_col >= s) & (node_col < s + c)       # (tile_n, 1)
            seg = jnp.max(jnp.where(m, x, -jnp.inf), axis=0, keepdims=True)
            acc_ref[g] = jnp.maximum(acc_ref[g], seg)      # (1, tile_d) row

        @pl.when(ni == pl.num_programs(1) - 1)
        def _finalize():
            out_ref[...] = acc_ref[...].astype(out_ref.dtype)

    return kernel


def _max_pool(feat, starts, counts, ends, out_dtype, compute_dtype,
              tile_n, tile_d):
    n_total, D = feat.shape
    n_graphs = int(counts.shape[0])
    itemsize = jnp.dtype(feat.dtype).itemsize
    acc_itemsize = jnp.dtype(compute_dtype).itemsize

    if tile_d is None:
        # Bound the sublane-padded (n_graphs, 1, tile_d) accumulator/out-block
        # footprint, then take the largest lane-aligned divisor of D.
        per_lane = n_graphs * 8 * (2 * itemsize + acc_itemsize)
        cap = max(128, ((16 << 20) // per_lane) // 128 * 128)
        tile_d = _pick_tile_d(D, target=min(512, cap), prefer_split=True)
    assert D % tile_d == 0, "tile_d must divide D"
    n_d_tiles = D // tile_d

    tile_n = _pick_tile_n(tile_n, n_total, tile_d, itemsize)
    n_node_tiles = pl.cdiv(n_total, tile_n)

    # Contiguous range of graphs intersecting each node tile (no host sync):
    # first graph ending after tile start / first graph starting at-or-after
    # tile end.  Empty graphs inside the range contribute nothing (mask empty).
    tile_starts = jnp.arange(n_node_tiles, dtype=jnp.int32) * tile_n
    g_lo = jnp.searchsorted(ends, tile_starts, side="right").astype(jnp.int32)
    g_hi = jnp.searchsorted(starts, tile_starts + tile_n,
                            side="left").astype(jnp.int32)

    need = (2 * tile_n * tile_d * itemsize
            + 2 * n_graphs * 8 * tile_d * jnp.dtype(out_dtype).itemsize
            + n_graphs * 8 * tile_d * acc_itemsize)

    out = pl.pallas_call(
        _make_max_kernel(tile_n, compute_dtype),
        out_shape=jax.ShapeDtypeStruct((n_graphs, 1, D), out_dtype),
        grid_spec=pltpu.PrefetchScalarGridSpec(
            num_scalar_prefetch=4,          # g_lo, g_hi, starts, counts -> SMEM
            grid=(n_d_tiles, n_node_tiles),
            in_specs=[
                pl.BlockSpec((tile_n, tile_d), lambda di, ni, *_: (ni, di)),
            ],
            out_specs=pl.BlockSpec((n_graphs, 1, tile_d),
                                   lambda di, ni, *_: (0, 0, di)),
            scratch_shapes=[pltpu.VMEM((n_graphs, 1, tile_d), compute_dtype)],
        ),
        compiler_params=pltpu.CompilerParams(
            dimension_semantics=("parallel", "arbitrary"),
            vmem_limit_bytes=_vmem_limit(need)),
    )(g_lo, g_hi, starts, counts, feat)
    return out.reshape(n_graphs, D)


# --------------------------------------------------------------------------- #
# public wrapper
# --------------------------------------------------------------------------- #
def node_pooling(features, n_nodes_per_graph, pooling: str = "mean", *,
                 tile_n=None, tile_g=None, tile_d=None):
    """features: [n_nodes, P, C]; n_nodes_per_graph: [n_graphs] int.

    Returns [n_graphs, C*P] in the torch module's flatten order
    (permute(0, 2, 1) then view).  Empty graphs: sum/mean -> 0, max -> -inf.
    """
    assert pooling in ("mean", "sum", "max")
    n_total, P, C = features.shape
    D = P * C
    n_graphs = int(n_nodes_per_graph.shape[0])

    # bf16 inputs stay bf16 through VPU/MXU (f32 accumulate); genuinely f32
    # inputs are never downcast.
    compute_dtype = (jnp.bfloat16 if features.dtype == jnp.bfloat16
                     else jnp.float32)

    # Lane-dense flatten [P, C] -> D; row-major view, no HBM transpose.
    feat = features.reshape(n_total, D)

    counts = n_nodes_per_graph.astype(jnp.int32)
    ends = jnp.cumsum(counts).astype(jnp.int32)
    starts = (ends - counts).astype(jnp.int32)

    if pooling in ("sum", "mean"):
        out = _sum_mean_pool(feat, starts, counts, pooling, features.dtype,
                             compute_dtype, tile_n, tile_g, tile_d)
    else:
        out = _max_pool(feat, starts, counts, ends, features.dtype,
                        compute_dtype, tile_n, tile_d)

    # Permute only the small pooled output into torch's permute(0,2,1).view order.
    return out.reshape(n_graphs, P, C).transpose(0, 2, 1).reshape(n_graphs, C * P)


def _reference(features, counts, pooling="mean"):
    """Pure-JAX reference matching the torch module."""
    n_total = features.shape[0]
    flat = jnp.transpose(features, (0, 2, 1)).reshape(n_total, -1)
    outs, off = [], 0
    for c in [int(v) for v in jax.device_get(counts)]:
        seg = flat[off:off + c]
        if pooling == "mean":
            outs.append(seg.mean(0))
        elif pooling == "sum":
            outs.append(seg.sum(0))
        else:
            outs.append(seg.max(0))
        off += c
    return jnp.stack(outs)


if __name__ == "__main__":
    key = jax.random.PRNGKey(0)
    k1, k2, k3 = jax.random.split(key, 3)

    # Case 1: 3 graphs (5/3/8 nodes), P=4, C=32 -> D=128, f32, single node tile.
    counts1 = jnp.array([5, 3, 8], dtype=jnp.int32)
    P1, C1 = 4, 32
    feats1 = jax.random.normal(k1, (int(counts1.sum()), P1, C1), jnp.float32)
    for mode in ("mean", "sum", "max"):
        out = jax.block_until_ready(node_pooling(feats1, counts1, pooling=mode))
        ref = _reference(feats1, counts1, mode)
        assert out.shape == (3, C1 * P1)
        assert jnp.allclose(out, ref, atol=1e-3, rtol=1e-3), mode

    # Case 2: multiple node tiles + ragged tail (23 nodes, tile_n=8), f32.
    counts2 = jnp.array([7, 5, 2, 9], dtype=jnp.int32)
    P2, C2 = 2, 64
    feats2 = jax.random.normal(k2, (int(counts2.sum()), P2, C2), jnp.float32)
    for mode in ("mean", "sum", "max"):
        out = jax.block_until_ready(
            node_pooling(feats2, counts2, pooling=mode, tile_n=8))
        ref = _reference(feats2, counts2, mode)
        assert out.shape == (4, C2 * P2)
        assert jnp.allclose(out, ref, atol=1e-3, rtol=1e-3), mode

    # Case 3: bf16 inputs exercise the bf16 MXU/VPU path (f32 accumulate).
    feats3 = jax.random.normal(k3, (int(counts1.sum()), P1, C1),
                               jnp.float32).astype(jnp.bfloat16)
    for mode in ("mean", "sum", "max"):
        out = jax.block_until_ready(node_pooling(feats3, counts1, pooling=mode))
        ref = _reference(feats3.astype(jnp.float32), counts1, mode)
        assert jnp.allclose(out.astype(jnp.float32), ref,
                            atol=2e-2, rtol=2e-2), mode

    print("KERNEL_OK")
</pallas_src>

<mosaic_0001>
module attributes {stable_mosaic.version = 11 : i64} {
  func.func @kernel(%arg0: i32, %arg1: i32, %arg2: i32, %arg3: memref<8x1xi32, #tpu.memory_space<vmem>>, %arg4: memref<8x1xi32, #tpu.memory_space<vmem>>, %arg5: memref<16x128xf32, #tpu.memory_space<vmem>>, %arg6: memref<8x128xf32, #tpu.memory_space<vmem>>, %arg7: memref<8x128xf32, #tpu.memory_space<vmem>>) attributes {dimension_semantics = [#tpu.dimension_semantics<parallel>, #tpu.dimension_semantics<parallel>, #tpu.dimension_semantics<arbitrary>], iteration_bounds = array<i64: 1, 1, 1>, scalar_prefetch = 0 : i64, scratch_operands = 1 : i64, tpu.core_type = #tpu.core_type<tc>, window_params = [{transform_indices = @transform_0, window_bounds = array<i64: 8, 1>}, {transform_indices = @transform_1, window_bounds = array<i64: 8, 1>}, {transform_indices = @transform_2, window_bounds = array<i64: 16, 128>}, {transform_indices = @transform_3, window_bounds = array<i64: 8, 128>}]} {
    %c0_i32 = arith.constant 0 : i32
    %0 = arith.cmpi eq, %arg2, %c0_i32 : i32
    %1 = arith.extui %0 : i1 to i32
    %c0_i32_0 = arith.constant 0 : i32
    %2 = arith.cmpi ne, %1, %c0_i32_0 : i32
    scf.if %2 {
      %cst_12 = arith.constant 0.000000e+00 : f32
      %25 = vector.broadcast %cst_12 : f32 to vector<8x128xf32>
      %c0_13 = arith.constant 0 : index
      %c0_14 = arith.constant 0 : index
      %26 = vector.load %arg7[%c0_13, %c0_14] : memref<8x128xf32, #tpu.memory_space<vmem>>, vector<8x128xf32>
      tpu.vector_store %arg7[%c0_13, %c0_14], %25 {strides = array<i32>} : memref<8x128xf32, #tpu.memory_space<vmem>>, vector<8x128xf32>,
    } else {
    }
    %c0 = arith.constant 0 : index
    %c0_1 = arith.constant 0 : index
    %3 = vector.load %arg3[%c0, %c0_1] : memref<8x1xi32, #tpu.memory_space<vmem>>, vector<8x1xi32>
    %c0_2 = arith.constant 0 : index
    %c0_3 = arith.constant 0 : index
    %4 = vector.load %arg4[%c0_2, %c0_3] : memref<8x1xi32, #tpu.memory_space<vmem>>, vector<8x1xi32>
    %c16_i32 = arith.constant 16 : i32
    %5 = arith.muli %arg2, %c16_i32 : i32
    %6 = tpu.iota {dimensions = array<i32: 1>} : vector<8x16xi32>
    %7 = vector.broadcast %5 : i32 to vector<8x16xi32>
    %8 = arith.addi %7, %6 : vector<8x16xi32>
    %9 = vector.broadcast %3 : vector<8x1xi32> to vector<8x16xi32>
    %10 = arith.cmpi sge, %8, %9 : vector<8x16xi32>
    %11 = arith.addi %3, %4 : vector<8x1xi32>
    %12 = vector.broadcast %11 : vector<8x1xi32> to vector<8x16xi32>
    %13 = arith.cmpi slt, %8, %12 : vector<8x16xi32>
    %14 = arith.andi %10, %13 : vector<8x16xi1>
    %15 = arith.extui %14 : vector<8x16xi1> to vector<8x16xi32>
    %16 = arith.sitofp %15 : vector<8x16xi32> to vector<8x16xf32>
    %c0_4 = arith.constant 0 : index
    %c0_5 = arith.constant 0 : index
    %17 = vector.load %arg5[%c0_4, %c0_5] : memref<16x128xf32, #tpu.memory_space<vmem>>, vector<16x128xf32>
    %c0_6 = arith.constant 0 : index
    %c0_7 = arith.constant 0 : index
    %18 = vector.load %arg7[%c0_6, %c0_7] : memref<8x128xf32, #tpu.memory_space<vmem>>, vector<8x128xf32>
    %cst = arith.constant dense<0.000000e+00> : vector<8x128xf32>
    %19 = tpu.matmul %16, %17, %cst {dimension_numbers = #tpu.dot_dimension_numbers<[1], [0], [0], [1], [0, 0, 1, 1], [], []>} : vector<8x16xf32>, vector<16x128xf32>, vector<8x128xf32> -> vector<8x128xf32>
    %20 = arith.addf %18, %19 : vector<8x128xf32>
    %c0_8 = arith.constant 0 : index
    %c0_9 = arith.constant 0 : index
    %21 = vector.load %arg7[%c0_8, %c0_9] : memref<8x128xf32, #tpu.memory_space<vmem>>, vector<8x128xf32>
    tpu.vector_store %arg7[%c0_8, %c0_9], %20 {strides = array<i32>} : memref<8x128xf32, #tpu.memory_space<vmem>>, vector<8x128xf32>,
    %c0_i32_10 = arith.constant 0 : i32
    %22 = arith.cmpi eq, %arg2, %c0_i32_10 : i32
    %23 = arith.extui %22 : i1 to i32
    %c0_i32_11 = arith.constant 0 : i32
    %24 = arith.cmpi ne, %23, %c0_i32_11 : i32
    scf.if %24 {
      %c0_12 = arith.constant 0 : index
      %c0_13 = arith.constant 0 : index
      %25 = vector.load %arg7[%c0_12, %c0_13] : memref<8x128xf32, #tpu.memory_space<vmem>>, vector<8x128xf32>
      %c1_i32 = arith.constant 1 : i32
      %26 = vector.broadcast %c1_i32 : i32 to vector<8x1xi32>
      %27 = arith.maxsi %4, %26 : vector<8x1xi32>
      %28 = arith.sitofp %27 : vector<8x1xi32> to vector<8x1xf32>
      %29 = tpu.reciprocal %28 : vector<8x1xf32> -> vector<8x1xf32>
      %30 = vector.broadcast %29 : vector<8x1xf32> to vector<8x128xf32>
      %31 = arith.mulf %25, %30 : vector<8x128xf32>
      %c0_14 = arith.constant 0 : index
      %c0_15 = arith.constant 0 : index
      %32 = vector.load %arg6[%c0_14, %c0_15] : memref<8x128xf32, #tpu.memory_space<vmem>>, vector<8x128xf32>
      tpu.vector_store %arg6[%c0_14, %c0_15], %31 {strides = array<i32>} : memref<8x128xf32, #tpu.memory_space<vmem>>, vector<8x128xf32>,
    } else {
    }
    return
  }
  func.func @transform_0(%arg0: i32, %arg1: i32, %arg2: i32) -> (i32, i32) {
    %c0_i32 = arith.constant 0 : i32
    %c0_i32_0 = arith.constant 0 : i32
    return %arg0, %c0_i32 : i32, i32
  }
  func.func @transform_1(%arg0: i32, %arg1: i32, %arg2: i32) -> (i32, i32) {
    %c0_i32 = arith.constant 0 : i32
    %c0_i32_0 = arith.constant 0 : i32
    return %arg0, %c0_i32 : i32, i32
  }
  func.func @transform_2(%arg0: i32, %arg1: i32, %arg2: i32) -> (i32, i32) {
    %c0_i32 = arith.constant 0 : i32
    return %arg2, %arg1 : i32, i32
  }
  func.func @transform_3(%arg0: i32, %arg1: i32, %arg2: i32) -> (i32, i32) {
    %c0_i32 = arith.constant 0 : i32
    return %arg0, %arg1 : i32, i32
  }
}

</mosaic_0001>

<llo_original>
// kernel: tpu_custom_call.1
$region0: #{tpu_custom_call.1}
  #allocation0 [shape = 'u32[]', space=smem, size = 0x4, offset = 0x4, fixed_abs, tag = 'smem constant byte address 0x4 - core index']
  #allocation1 [shape = 'u32[72,128]{1,0:T(1,128)}', space=vmem, size = 0x9000, scoped, tag = 'internal scratch']
  #allocation2 [shape = 'f32[8,128]{1,0:T(8,128)}', space=vmem, size = 0x1000, scoped, tag = 'scratch operand']
  %s0 = inlined_call_operand.vmem [shape: s32[8,1], index: 0, kind: input, shape index: {}]
  %s1 = inlined_call_operand.vmem [shape: s32[8,1], index: 1, kind: input, shape index: {}]
  %s2 = inlined_call_operand.vmem [shape: f32[16,128], index: 2, kind: input, shape index: {}]
  %s3 = inlined_call_operand.hbm [shape: f32[8,128], index: 3, kind: output, shape index: {}]
  %s4 = sld [smem:[#allocation0]]
  $region30: #{tpu_custom_call.1} parent=0
    _
  %s6 = ssub.s32 1, %s4
  %s7 = scalar_select 0, %s6, %s4
  $region1: #{tpu_custom_call.1} parent=0
    #allocation3 [shape = 'u8[4096]{0}', space=vmem, size = 0x1000, scoped, tag = 'output window, operand 0, single buffered']
    #allocation4 [shape = 's32[1]{0}', space=sflag, size = 0x4, scoped, tag = 'scoped memory for tpu_custom_call.1']
    %8 = vsyncpa [#allocation4], 0
    // Predicated region
    $region2: #{tpu_custom_call.1} parent=1 // pred_check
      _
    $region3: #{tpu_custom_call.1} parent=1 // pred_check_branch
      %10 = sbr.rel (0) target = $region5
    $region4: #{tpu_custom_call.1} parent=1 // pred_region
      _
    $region5: #{tpu_custom_call.1} parent=1 // pred_fallthru
      _
    // Predicated region
    $region6: #{tpu_custom_call.1} parent=1 // pred_check
      _
    $region7: #{tpu_custom_call.1} parent=1 // pred_check_branch
      %12 = sbr.rel (0) target = $region9
    $region8: #{tpu_custom_call.1} parent=1 // pred_region
      _
    $region9: #{tpu_custom_call.1} parent=1 // pred_fallthru
      _
    // Predicated region
    $region10: #{tpu_custom_call.1} parent=1 // pred_check
      _
    $region11: #{tpu_custom_call.1} parent=1 // pred_check_branch
      %14 = sbr.rel (0) target = $region13
    $region12: #{tpu_custom_call.1} parent=1 // pred_region
      _
    $region13: #{tpu_custom_call.1} parent=1 // pred_fallthru
      _
    %p15 = scmp.eq.s32.totalorder 0, 0
    // Predicated region
    $region14: #{tpu_custom_call.1} parent=1 // pred_check
      %p16 = pneg %p15
    $region15: #{tpu_custom_call.1} parent=1 // pred_check_branch
      %18 = sbr.rel (%p16) target = $region17
    $region16: #{tpu_custom_call.1} parent=1 // pred_region
      %19 = vst [vmem:[#allocation2] sm:$0xff] 0.0
    $region17: #{tpu_custom_call.1} parent=1 // pred_fallthru
      _
    %v20 = vld [vmem:[%s0] sm:$0xff]
    %v21 = vld [vmem:[%s1] sm:$0xff]
    %s22 = smul.u32 0, 16
    %v23 = vlaneseq
    %v24 = vand.u32 %v23, 127
    %v25 = vstv %s22
    %v26 = vadd.s32 %v25, %v24
    %27 = vset.pattern.permute.xlu0 0
    %28 = vperm.xlu0 %27, %v20
    %v29 = vpop.permute.xlu0 %28
    %vm30 = vcmp.ge.s32.totalorder %v26, %v29
    %v31 = vadd.s32 %v20, %v21
    %32 = vset.pattern.permute.xlu0 0
    %33 = vperm.xlu0 %32, %v31
    %v34 = vpop.permute.xlu0 %33
    %vm35 = vcmp.lt.s32.totalorder %v26, %v34
    %vm36 = vmand %vm30, %vm35
    %v37 = vsel %vm36, 1, 0
    %v38 = vcvt.s32.f32 %v37
    %v39 = vld [vmem:[%s2] sm:$0xff]
    %v40 = vld [vmem:[%s2 + $0x8] sm:$0xff]
    %v41 = vld [vmem:[#allocation2] sm:$0xff]
    %vm42 = vcmask 130048
    %v44 = vsel %vm42, %v38, 0
    %46 = vmatpush.msra.mxu0 0.0
    %47 = vmatpush.msra.mxu0 0.0
    %48 = vmatpush.msra.mxu0 0.0
    %49 = vmatpush.msra.mxu0 0.0
    %50 = vmatpush.msra.mxu0 0.0
    %51 = vmatpush.msra.mxu0 0.0
    %52 = vmatpush.msra.mxu0 0.0
    %53 = vmatpush.msra.mxu0 0.0
    %54 = vmatpush.msra.mxu0 0.0
    %55 = vmatpush.msra.mxu0 0.0
    %56 = vmatpush.msra.mxu0 0.0
    %57 = vmatpush.msra.mxu0 0.0
    %58 = vmatpush.msra.mxu0 0.0
    %59 = vmatpush.msra.mxu0 0.0
    %60 = vmatpush.msra.mxu0 %v40
    %61 = vmatpush.msra.mxu0 %v39
    %62 = vmatmul.f32.gmra.mxu0 %v44
    %v63 = vpop.f32.mrf.mxu0
    %v64 = vadd.f32 0.0, %v63
    %65 = vdwg.mxu0
    %v66 = vadd.f32 %v41, %v64
    %67 = vst [vmem:[#allocation2] sm:$0xff] %v66
    // Predicated region
    $region18: #{tpu_custom_call.1} parent=1 // pred_check
      %p68 = pneg %p15
    $region19: #{tpu_custom_call.1} parent=1 // pred_check_branch
      %70 = sbr.rel (%p68) target = $region21
    $region20: #{tpu_custom_call.1} parent=1 // pred_region
      %v71 = vld [vmem:[#allocation2] sm:$0xff]
      %vm72 = vcmp.gt.s32.totalorder %v21, 1
      %v73 = vsel %vm72, %v21, 1
      %v74 = vcvt.s32.f32 %v73
      %v75 = vrcp.pop %v74
      %v76 = vmul.f32 %v74, %v75
      %v77 = vsub.f32 1.0, %v76
      %v78 = vmul.f32 %v75, %v77
      %v79 = vadd.f32 %v75, %v78
      %vm80 = vweird.f32 %v74
      %vm81 = vweird.f32 %v75
      %vm82 = vmor %vm80, %vm81
      %v83 = vsel %vm82, %v75, %v79
      %v84 = vand.u32 2147483647, %v74
      %vm85 = vcmp.eq.f32.partialorder %v84, 8.507059e+37
      %v86 = vand.u32 %v74, 2147483648
      %v87 = vor.u32 1.1754944e-38, %v86
      %v88 = vsel %vm85, %v87, %v83
      %90 = vset.pattern.permute.xlu0 0
      %91 = vperm.xlu0 %90, %v88
      %v92 = vpop.permute.xlu0 %91
      %v94 = vmul.f32 %v71, %v92
      %95 = vst [vmem:[#allocation3] sm:$0xff] %v94
    $region21: #{tpu_custom_call.1} parent=1 // pred_fallthru
      _
    // Predicated region
    $region22: #{tpu_custom_call.1} parent=1 // pred_check
      _
    $region23: #{tpu_custom_call.1} parent=1 // pred_check_branch
      %97 = sbr.rel (0) target = $region25
    $region24: #{tpu_custom_call.1} parent=1 // pred_region
      %99 = vsyncadd [#allocation4], 0
      %s101 = sshll.u32 [#allocation3], 4
      %s102 = int_to_ptr.vmem [resolvable:$true] %s101
      %s103 = sshll.u32 %s3, 4
      %s104 = int_to_ptr.hbm [resolvable:$true] %s103
      %106 = dma.vmem_to_hbm [thread:$0]  %s102, 128, %s104, [#allocation4]
    $region25: #{tpu_custom_call.1} parent=1 // pred_fallthru
      _
    // Predicated region
    $region26: #{tpu_custom_call.1} parent=1 // pred_check
      _
    $region27: #{tpu_custom_call.1} parent=1 // pred_check_branch
      %108 = sbr.rel (0) target = $region29
    $region28: #{tpu_custom_call.1} parent=1 // pred_region
      %110 = dma.done [#allocation4], 128
    $region29: #{tpu_custom_call.1} parent=1 // pred_fallthru
      _
    %111 = vsyncpa [#allocation4], 1

</llo_original>
